<compile_context>
chip_gen: v7x
topology: tpu7x:2x2x1
jax: 0.10.0
libtpu: 0.0.40
codegen_flags: <defaults>
</compile_context>

<pallas_src>
import functools

import jax
import jax.numpy as jnp
from jax import lax
from jax.experimental import pallas as pl
from jax.experimental.pallas import tpu as pltpu

BN_EPS = 1e-5
NEG_SLOPE = 0.2
_LANE = 128
_MXU_MIN_CIN = 16      # below this, the 1x1 conv is cheaper as VPU broadcast-FMAs
_TM_CAP = 8192


def _round_up(n, k):
    return (n + k - 1) // k * k


def _cdiv(a, b):
    return -(-a // b)


def _vmem_budget():
    """(scoped vmem_limit_bytes, working-set budget) -- generation aware."""
    cap = 64 << 20                                # safe fallback (v7x per-TC VMEM)
    try:
        cap = int(pltpu.get_tpu_info().vmem_capacity_bytes)
    except Exception:
        pass
    limit = min(cap * 3 // 4, 100 << 20)          # v5e/v6e: 96 MiB, v7x: 48 MiB
    budget = min(cap // 2, 64 << 20)              # v5e/v6e: 64 MiB, v7x: 32 MiB
    return limit, budget


def _choose_tile_p(p, cin, cout, in_bytes, budget):
    """Pick (TM, Pp): pixel-tile width and padded per-image pixel count."""
    # Double-buffered x tile + out tile, plus f32 in-kernel conv scratch.
    per_col = 2 * (4 * cin * in_bytes + cout * 4) + 4 * cin * 4 + 6 * cout * 4
    tm_max = max(_LANE, min(_TM_CAP, budget // per_col // _LANE * _LANE))
    if p <= tm_max:
        return p, p                     # single tile == full dim: legal, no padding
    # Prefer a lane-dense tile that divides P exactly (no output slice copy).
    for tm in range(tm_max, _LANE - 1, -_LANE):
        if p % tm == 0:
            return tm, p
    tm = min(tm_max, _round_up(_cdiv(p, _cdiv(p, tm_max)), _LANE))
    return tm, _round_up(p, tm)


def _conv_pool(x, w, use_mxu):
    """1x1 conv ((Cout,Cin) @ (Cin,TM)) + max over the 4 pool phases -> f32 (Cout, TM).

    x: (4, Cin, TM) in the compute dtype; w: (Cout, Cin) in the compute dtype.
    The conv bias is NOT added here: max(a+b, c+b) == max(a, c) + b, so it is
    hoisted past the max (pass 1) or folded into the BN shift (pass 2).
    """
    nphase, cin, _ = x.shape

    def one(a):
        if use_mxu:
            return jnp.dot(w, x[a], preferred_element_type=jnp.float32)
        xa = x[a].astype(jnp.float32)
        wf = w.astype(jnp.float32)
        acc = wf[:, 0:1] * xa[0:1, :]
        for ci in range(1, cin):                   # static unroll, Cin is tiny
            acc = acc + wf[:, ci:ci + 1] * xa[ci:ci + 1, :]
        return acc

    c = one(0)
    for a in range(1, nphase):
        c = jnp.maximum(c, one(a))
    return c


def _stats_kernel(x_ref, w_ref, b_ref, sum_ref, sq_ref, *, p_valid, use_mxu):
    """Pass 1: conv + maxpool on one (image, pixel-tile); accumulate BN statistics.

    x_ref:   (4, Cin, TM)  pool-phase-major activations (compute dtype)
    w_ref:   (Cout, Cin)   conv weight
    b_ref:   (Cout, 1)     conv bias (f32)
    sum_ref: (Cout, 1)     per-image running sum(z)   (resident accumulator)
    sq_ref:  (Cout, 1)     per-image running sum(z^2) (resident accumulator)
    """
    t = pl.program_id(1)

    @pl.when(t == 0)
    def _():
        sum_ref[...] = jnp.zeros_like(sum_ref)
        sq_ref[...] = jnp.zeros_like(sq_ref)

    c = _conv_pool(x_ref[...], w_ref[...], use_mxu)               # (Cout, TM) f32
    z = c + b_ref[...]                                            # bias after the max

    # Mask padded pixel columns so the batch stats use exactly N*P samples.
    tm = x_ref.shape[-1]
    cols = t * tm + lax.broadcasted_iota(jnp.int32, (1, tm), 1)
    zm = jnp.where(cols < p_valid, z, 0.0)
    sum_ref[...] += jnp.sum(zm, axis=1, keepdims=True)
    sq_ref[...] += jnp.sum(zm * zm, axis=1, keepdims=True)


def _bn_lrelu_kernel(x_ref, w_ref, b_ref, g_ref, be_ref, sum_ref, sq_ref, o_ref,
                     *, m_total, use_mxu):
    """Pass 2: recompute conv+maxpool, apply folded train-mode BN + LeakyReLU(0.2)."""
    c = _conv_pool(x_ref[...], w_ref[...], use_mxu)               # (Cout, TM) f32

    inv_m = 1.0 / m_total
    mean = jnp.sum(sum_ref[...], axis=0) * inv_m                  # combine per-image partials
    ex2 = jnp.sum(sq_ref[...], axis=0) * inv_m
    # TODO(synk): E[z^2] - mean^2 in f32 can lose precision for very large M / |mean|;
    #             switch to a shifted/compensated accumulation if that regime shows up.
    var = jnp.maximum(ex2 - mean * mean, 0.0)
    scale = g_ref[...] * lax.rsqrt(var + BN_EPS)                  # rsqrt -> EUP slot
    shift = be_ref[...] + (b_ref[...] - mean) * scale             # conv bias folded in
    y = c * scale + shift                                         # one FMA per element
    o_ref[...] = jnp.where(y > 0, y, NEG_SLOPE * y).astype(o_ref.dtype)


def basic_block_au(x, conv_w, conv_b, bn_gamma, bn_beta,
                   *, compute_dtype=jnp.bfloat16, tile_p=None):
    """BasicBlock_AU forward (defaults: 1x1 conv, stride 1, maxpool 2x2, pad 0).

    x: (N, Cin, H, W) f32;  conv_w: (Cout, Cin);  conv_b/bn_gamma/bn_beta: (Cout,)
    Returns (N, Cout, H//2, W//2) f32.
    """
    N, Cin, H, W = x.shape
    Cout = conv_w.shape[0]
    assert conv_w.shape == (Cout, Cin)
    assert H % 2 == 0 and W % 2 == 0, "MaxPool2d(2,2) with padding=0 needs even H, W"
    Hp, Wp = H // 2, W // 2
    P = Hp * Wp                     # pixels per image after pooling
    m_total = N * P                 # BN sample count per channel
    in_bytes = jnp.dtype(compute_dtype).itemsize

    vmem_limit, budget = _vmem_budget()
    if tile_p is None:
        tm, pp = _choose_tile_p(P, Cin, Cout, in_bytes, budget)
    else:
        tm = P if tile_p >= P else _round_up(tile_p, _LANE)
        pp = _round_up(P, tm)
    n_tiles = pp // tm
    use_mxu = Cin >= _MXU_MIN_CIN

    # --- glue (plain XLA): NCHW -> pool-phase-major (N, 4, Cin, Pp), compute dtype.
    # TODO(synk): accept NHWC / fuse with the producer to avoid this HBM round trip.
    xt = x.reshape(N, Cin, Hp, 2, Wp, 2)
    xt = jnp.transpose(xt, (0, 3, 5, 1, 2, 4)).reshape(N, 4, Cin, P)
    if pp != P:
        xt = jnp.pad(xt, ((0, 0), (0, 0), (0, 0), (0, pp - P)))
    x_t = xt.astype(compute_dtype)

    w = conv_w.astype(compute_dtype)                               # (Cout, Cin)
    b2 = conv_b.reshape(Cout, 1).astype(jnp.float32)
    g2 = bn_gamma.reshape(Cout, 1).astype(jnp.float32)
    be2 = bn_beta.reshape(Cout, 1).astype(jnp.float32)

    x_spec = pl.BlockSpec((None, 4, Cin, tm), lambda n, t: (n, 0, 0, t))
    w_spec = pl.BlockSpec((Cout, Cin), lambda n, t: (0, 0))
    vec_spec = pl.BlockSpec((Cout, 1), lambda n, t: (0, 0))
    stat_out_spec = pl.BlockSpec((None, Cout, 1), lambda n, t: (n, 0, 0))
    stat_in_spec = pl.BlockSpec((N, Cout, 1), lambda n, t: (0, 0, 0))
    out_spec = pl.BlockSpec((None, Cout, tm), lambda n, t: (n, 0, t))

    # Pass 1: per-image BN statistics (batch axis parallel, tile axis = reduction).
    z_sum, z_sq = pl.pallas_call(
        functools.partial(_stats_kernel, p_valid=P, use_mxu=use_mxu),
        out_shape=(jax.ShapeDtypeStruct((N, Cout, 1), jnp.float32),
                   jax.ShapeDtypeStruct((N, Cout, 1), jnp.float32)),
        grid=(N, n_tiles),
        in_specs=[x_spec, w_spec, vec_spec],
        out_specs=(stat_out_spec, stat_out_spec),
        compiler_params=pltpu.CompilerParams(
            dimension_semantics=("parallel", "arbitrary"),
            vmem_limit_bytes=vmem_limit),
    )(x_t, w, b2)

    # Pass 2: recompute conv+maxpool, folded BN + LeakyReLU, write final output.
    out_p = pl.pallas_call(
        functools.partial(_bn_lrelu_kernel, m_total=m_total, use_mxu=use_mxu),
        out_shape=jax.ShapeDtypeStruct((N, Cout, pp), jnp.float32),
        grid=(N, n_tiles),
        in_specs=[x_spec, w_spec, vec_spec, vec_spec, vec_spec,
                  stat_in_spec, stat_in_spec],
        out_specs=out_spec,
        compiler_params=pltpu.CompilerParams(
            dimension_semantics=("parallel", "parallel"),
            vmem_limit_bytes=vmem_limit),
    )(x_t, w, b2, g2, be2, z_sum, z_sq)

    out = out_p if pp == P else out_p[:, :, :P]
    return out.reshape(N, Cout, Hp, Wp)                 # free reshape, no transpose


def reference(x, conv_w, conv_b, bn_gamma, bn_beta):
    """Pure-JAX reference matching the PyTorch forward (train-mode BN)."""
    hp = lax.Precision.HIGHEST
    z = jnp.einsum("nchw,oc->nohw", x, conv_w, precision=hp) \
        + conv_b[None, :, None, None]
    N, Cout, H, W = z.shape
    z = z.reshape(N, Cout, H // 2, 2, W // 2, 2).max(axis=(3, 5))
    mean = z.mean(axis=(0, 2, 3), keepdims=True)
    var = ((z - mean) ** 2).mean(axis=(0, 2, 3), keepdims=True)
    zh = (z - mean) / jnp.sqrt(var + BN_EPS)
    y = zh * bn_gamma[None, :, None, None] + bn_beta[None, :, None, None]
    return jnp.where(y > 0, y, NEG_SLOPE * y)


if __name__ == "__main__":
    key = jax.random.PRNGKey(0)

    def make_case(k, N, Cin, Cout, H, W):
        k_x, k_w, k_b, k_g, k_be = jax.random.split(k, 5)
        x = jax.random.normal(k_x, (N, Cin, H, W), dtype=jnp.float32)
        conv_w = jax.random.normal(k_w, (Cout, Cin), dtype=jnp.float32) * 0.1
        conv_b = jax.random.normal(k_b, (Cout,), dtype=jnp.float32) * 0.1
        bn_gamma = 1.0 + 0.1 * jax.random.normal(k_g, (Cout,), dtype=jnp.float32)
        bn_beta = 0.1 * jax.random.normal(k_be, (Cout,), dtype=jnp.float32)
        return x, conv_w, conv_b, bn_gamma, bn_beta

    k1, k2, k3 = jax.random.split(key, 3)

    # Case 1: module-default toy shape (small-Cin VPU conv path, single tile).
    args1 = make_case(k1, 2, 4, 8, 16, 16)
    ref1 = reference(*args1)
    out1_f32 = jax.block_until_ready(basic_block_au(*args1, compute_dtype=jnp.float32))
    assert out1_f32.shape == (2, 8, 8, 8), out1_f32.shape
    err1 = float(jnp.max(jnp.abs(out1_f32 - ref1)))
    assert jnp.allclose(out1_f32, ref1, atol=1e-4, rtol=1e-4), err1
    out1_bf16 = jax.block_until_ready(basic_block_au(*args1))      # default bf16 inputs
    err1b = float(jnp.max(jnp.abs(out1_bf16 - ref1)))
    assert jnp.allclose(out1_bf16, ref1, atol=6e-2, rtol=6e-2), err1b

    # Case 2: P=180 with an explicit 128-wide tile -> 2 tiles/image, masked tail,
    # cross-tile stat accumulation on the "arbitrary" axis, output tail slicing.
    args2 = make_case(k2, 3, 6, 16, 36, 20)
    ref2 = reference(*args2)
    out2 = jax.block_until_ready(
        basic_block_au(*args2, compute_dtype=jnp.float32, tile_p=128))
    assert out2.shape == (3, 16, 18, 10), out2.shape
    err2 = float(jnp.max(jnp.abs(out2 - ref2)))
    assert jnp.allclose(out2, ref2, atol=1e-4, rtol=1e-4), err2

    # Case 3: larger channel count -> MXU dot path, default bf16 compute.
    args3 = make_case(k3, 2, 32, 64, 16, 16)
    ref3 = reference(*args3)
    out3 = jax.block_until_ready(basic_block_au(*args3))
    assert out3.shape == (2, 64, 8, 8), out3.shape
    err3 = float(jnp.max(jnp.abs(out3 - ref3)))
    assert jnp.allclose(out3, ref3, atol=6e-2, rtol=6e-2), err3

    print("KERNEL_OK")
</pallas_src>

<mosaic_0001>
module attributes {stable_mosaic.version = 11 : i64} {
  func.func @_stats_kernel(%arg0: i32, %arg1: i32, %arg2: memref<1x4x4x64xf32, #tpu.memory_space<vmem>>, %arg3: memref<8x4xf32, #tpu.memory_space<vmem>>, %arg4: memref<8x1xf32, #tpu.memory_space<vmem>>, %arg5: memref<1x8x1xf32, #tpu.memory_space<vmem>>, %arg6: memref<1x8x1xf32, #tpu.memory_space<vmem>>) attributes {dimension_semantics = [#tpu.dimension_semantics<parallel>, #tpu.dimension_semantics<arbitrary>], iteration_bounds = array<i64: 2, 1>, scalar_prefetch = 0 : i64, scratch_operands = 0 : i64, tpu.core_type = #tpu.core_type<tc>, window_params = [{transform_indices = @transform_0, window_bounds = array<i64: 1, 4, 4, 64>}, {pipeline_mode = #tpu.pipeline_mode<synchronous>, transform_indices = @transform_1, window_bounds = array<i64: 8, 4>}, {pipeline_mode = #tpu.pipeline_mode<synchronous>, transform_indices = @transform_2, window_bounds = array<i64: 8, 1>}, {transform_indices = @transform_3, window_bounds = array<i64: 1, 8, 1>}, {transform_indices = @transform_4, window_bounds = array<i64: 1, 8, 1>}]} {
    %c0_i32 = arith.constant 0 : i32
    %0 = arith.cmpi eq, %arg1, %c0_i32 : i32
    %1 = arith.extui %0 : i1 to i32
    %c0_i32_0 = arith.constant 0 : i32
    %2 = arith.cmpi ne, %1, %c0_i32_0 : i32
    scf.if %2 {
      %cst_23 = arith.constant 0.000000e+00 : f32
      %139 = vector.broadcast %cst_23 : f32 to vector<8x1xf32>
      %c0_24 = arith.constant 0 : index
      %c0_25 = arith.constant 0 : index
      %c0_26 = arith.constant 0 : index
      %140 = vector.load %arg5[%c0_24, %c0_25, %c0_26] : memref<1x8x1xf32, #tpu.memory_space<vmem>>, vector<1x8x1xf32>
      %141 = vector.shape_cast %140 : vector<1x8x1xf32> to vector<8x1xf32>
      %142 = vector.shape_cast %139 : vector<8x1xf32> to vector<1x8x1xf32>
      tpu.vector_store %arg5[%c0_24, %c0_25, %c0_26], %142 {strides = array<i32>} : memref<1x8x1xf32, #tpu.memory_space<vmem>>, vector<1x8x1xf32>,
      %cst_27 = arith.constant 0.000000e+00 : f32
      %143 = vector.broadcast %cst_27 : f32 to vector<8x1xf32>
      %c0_28 = arith.constant 0 : index
      %c0_29 = arith.constant 0 : index
      %c0_30 = arith.constant 0 : index
      %144 = vector.load %arg6[%c0_28, %c0_29, %c0_30] : memref<1x8x1xf32, #tpu.memory_space<vmem>>, vector<1x8x1xf32>
      %145 = vector.shape_cast %144 : vector<1x8x1xf32> to vector<8x1xf32>
      %146 = vector.shape_cast %143 : vector<8x1xf32> to vector<1x8x1xf32>
      tpu.vector_store %arg6[%c0_28, %c0_29, %c0_30], %146 {strides = array<i32>} : memref<1x8x1xf32, #tpu.memory_space<vmem>>, vector<1x8x1xf32>,
    } else {
    }
    %c0 = arith.constant 0 : index
    %c0_1 = arith.constant 0 : index
    %c0_2 = arith.constant 0 : index
    %c0_3 = arith.constant 0 : index
    %3 = vector.load %arg2[%c0, %c0_1, %c0_2, %c0_3] : memref<1x4x4x64xf32, #tpu.memory_space<vmem>>, vector<1x4x4x64xf32>
    %4 = vector.shape_cast %3 : vector<1x4x4x64xf32> to vector<4x4x64xf32>
    %c0_4 = arith.constant 0 : index
    %c0_5 = arith.constant 0 : index
    %5 = vector.load %arg3[%c0_4, %c0_5] : memref<8x4xf32, #tpu.memory_space<vmem>>, vector<8x4xf32>
    %6 = vector.extract_strided_slice %4 {offsets = [0, 0, 0], sizes = [1, 4, 64], strides = [1, 1, 1]} : vector<4x4x64xf32> to vector<1x4x64xf32>
    %7 = vector.shape_cast %6 : vector<1x4x64xf32> to vector<4x64xf32>
    %8 = vector.extract_strided_slice %5 {offsets = [0, 0], sizes = [8, 1], strides = [1, 1]} : vector<8x4xf32> to vector<8x1xf32>
    %9 = vector.extract_strided_slice %7 {offsets = [0, 0], sizes = [1, 64], strides = [1, 1]} : vector<4x64xf32> to vector<1x64xf32>
    %10 = vector.broadcast %8 : vector<8x1xf32> to vector<8x64xf32>
    %11 = vector.broadcast %9 : vector<1x64xf32> to vector<8x64xf32>
    %12 = arith.mulf %10, %11 : vector<8x64xf32>
    %13 = vector.extract_strided_slice %5 {offsets = [0, 1], sizes = [8, 1], strides = [1, 1]} : vector<8x4xf32> to vector<8x1xf32>
    %14 = vector.extract_strided_slice %7 {offsets = [1, 0], sizes = [1, 64], strides = [1, 1]} : vector<4x64xf32> to vector<1x64xf32>
    %15 = vector.broadcast %13 : vector<8x1xf32> to vector<8x64xf32>
    %16 = vector.broadcast %14 : vector<1x64xf32> to vector<8x64xf32>
    %17 = arith.mulf %15, %16 : vector<8x64xf32>
    %18 = arith.addf %12, %17 : vector<8x64xf32>
    %19 = vector.extract_strided_slice %5 {offsets = [0, 2], sizes = [8, 1], strides = [1, 1]} : vector<8x4xf32> to vector<8x1xf32>
    %20 = vector.extract_strided_slice %7 {offsets = [2, 0], sizes = [1, 64], strides = [1, 1]} : vector<4x64xf32> to vector<1x64xf32>
    %21 = vector.broadcast %19 : vector<8x1xf32> to vector<8x64xf32>
    %22 = vector.broadcast %20 : vector<1x64xf32> to vector<8x64xf32>
    %23 = arith.mulf %21, %22 : vector<8x64xf32>
    %24 = arith.addf %18, %23 : vector<8x64xf32>
    %25 = vector.extract_strided_slice %5 {offsets = [0, 3], sizes = [8, 1], strides = [1, 1]} : vector<8x4xf32> to vector<8x1xf32>
    %26 = vector.extract_strided_slice %7 {offsets = [3, 0], sizes = [1, 64], strides = [1, 1]} : vector<4x64xf32> to vector<1x64xf32>
    %27 = vector.broadcast %25 : vector<8x1xf32> to vector<8x64xf32>
    %28 = vector.broadcast %26 : vector<1x64xf32> to vector<8x64xf32>
    %29 = arith.mulf %27, %28 : vector<8x64xf32>
    %30 = arith.addf %24, %29 : vector<8x64xf32>
    %31 = vector.extract_strided_slice %4 {offsets = [1, 0, 0], sizes = [1, 4, 64], strides = [1, 1, 1]} : vector<4x4x64xf32> to vector<1x4x64xf32>
    %32 = vector.shape_cast %31 : vector<1x4x64xf32> to vector<4x64xf32>
    %33 = vector.extract_strided_slice %5 {offsets = [0, 0], sizes = [8, 1], strides = [1, 1]} : vector<8x4xf32> to vector<8x1xf32>
    %34 = vector.extract_strided_slice %32 {offsets = [0, 0], sizes = [1, 64], strides = [1, 1]} : vector<4x64xf32> to vector<1x64xf32>
    %35 = vector.broadcast %33 : vector<8x1xf32> to vector<8x64xf32>
    %36 = vector.broadcast %34 : vector<1x64xf32> to vector<8x64xf32>
    %37 = arith.mulf %35, %36 : vector<8x64xf32>
    %38 = vector.extract_strided_slice %5 {offsets = [0, 1], sizes = [8, 1], strides = [1, 1]} : vector<8x4xf32> to vector<8x1xf32>
    %39 = vector.extract_strided_slice %32 {offsets = [1, 0], sizes = [1, 64], strides = [1, 1]} : vector<4x64xf32> to vector<1x64xf32>
    %40 = vector.broadcast %38 : vector<8x1xf32> to vector<8x64xf32>
    %41 = vector.broadcast %39 : vector<1x64xf32> to vector<8x64xf32>
    %42 = arith.mulf %40, %41 : vector<8x64xf32>
    %43 = arith.addf %37, %42 : vector<8x64xf32>
    %44 = vector.extract_strided_slice %5 {offsets = [0, 2], sizes = [8, 1], strides = [1, 1]} : vector<8x4xf32> to vector<8x1xf32>
    %45 = vector.extract_strided_slice %32 {offsets = [2, 0], sizes = [1, 64], strides = [1, 1]} : vector<4x64xf32> to vector<1x64xf32>
    %46 = vector.broadcast %44 : vector<8x1xf32> to vector<8x64xf32>
    %47 = vector.broadcast %45 : vector<1x64xf32> to vector<8x64xf32>
    %48 = arith.mulf %46, %47 : vector<8x64xf32>
    %49 = arith.addf %43, %48 : vector<8x64xf32>
    %50 = vector.extract_strided_slice %5 {offsets = [0, 3], sizes = [8, 1], strides = [1, 1]} : vector<8x4xf32> to vector<8x1xf32>
    %51 = vector.extract_strided_slice %32 {offsets = [3, 0], sizes = [1, 64], strides = [1, 1]} : vector<4x64xf32> to vector<1x64xf32>
    %52 = vector.broadcast %50 : vector<8x1xf32> to vector<8x64xf32>
    %53 = vector.broadcast %51 : vector<1x64xf32> to vector<8x64xf32>
    %54 = arith.mulf %52, %53 : vector<8x64xf32>
    %55 = arith.addf %49, %54 : vector<8x64xf32>
    %56 = arith.maximumf %30, %55 : vector<8x64xf32>
    %57 = vector.extract_strided_slice %4 {offsets = [2, 0, 0], sizes = [1, 4, 64], strides = [1, 1, 1]} : vector<4x4x64xf32> to vector<1x4x64xf32>
    %58 = vector.shape_cast %57 : vector<1x4x64xf32> to vector<4x64xf32>
    %59 = vector.extract_strided_slice %5 {offsets = [0, 0], sizes = [8, 1], strides = [1, 1]} : vector<8x4xf32> to vector<8x1xf32>
    %60 = vector.extract_strided_slice %58 {offsets = [0, 0], sizes = [1, 64], strides = [1, 1]} : vector<4x64xf32> to vector<1x64xf32>
    %61 = vector.broadcast %59 : vector<8x1xf32> to vector<8x64xf32>
    %62 = vector.broadcast %60 : vector<1x64xf32> to vector<8x64xf32>
    %63 = arith.mulf %61, %62 : vector<8x64xf32>
    %64 = vector.extract_strided_slice %5 {offsets = [0, 1], sizes = [8, 1], strides = [1, 1]} : vector<8x4xf32> to vector<8x1xf32>
    %65 = vector.extract_strided_slice %58 {offsets = [1, 0], sizes = [1, 64], strides = [1, 1]} : vector<4x64xf32> to vector<1x64xf32>
    %66 = vector.broadcast %64 : vector<8x1xf32> to vector<8x64xf32>
    %67 = vector.broadcast %65 : vector<1x64xf32> to vector<8x64xf32>
    %68 = arith.mulf %66, %67 : vector<8x64xf32>
    %69 = arith.addf %63, %68 : vector<8x64xf32>
    %70 = vector.extract_strided_slice %5 {offsets = [0, 2], sizes = [8, 1], strides = [1, 1]} : vector<8x4xf32> to vector<8x1xf32>
    %71 = vector.extract_strided_slice %58 {offsets = [2, 0], sizes = [1, 64], strides = [1, 1]} : vector<4x64xf32> to vector<1x64xf32>
    %72 = vector.broadcast %70 : vector<8x1xf32> to vector<8x64xf32>
    %73 = vector.broadcast %71 : vector<1x64xf32> to vector<8x64xf32>
    %74 = arith.mulf %72, %73 : vector<8x64xf32>
    %75 = arith.addf %69, %74 : vector<8x64xf32>
    %76 = vector.extract_strided_slice %5 {offsets = [0, 3], sizes = [8, 1], strides = [1, 1]} : vector<8x4xf32> to vector<8x1xf32>
    %77 = vector.extract_strided_slice %58 {offsets = [3, 0], sizes = [1, 64], strides = [1, 1]} : vector<4x64xf32> to vector<1x64xf32>
    %78 = vector.broadcast %76 : vector<8x1xf32> to vector<8x64xf32>
    %79 = vector.broadcast %77 : vector<1x64xf32> to vector<8x64xf32>
    %80 = arith.mulf %78, %79 : vector<8x64xf32>
    %81 = arith.addf %75, %80 : vector<8x64xf32>
    %82 = arith.maximumf %56, %81 : vector<8x64xf32>
    %83 = vector.extract_strided_slice %4 {offsets = [3, 0, 0], sizes = [1, 4, 64], strides = [1, 1, 1]} : vector<4x4x64xf32> to vector<1x4x64xf32>
    %84 = vector.shape_cast %83 : vector<1x4x64xf32> to vector<4x64xf32>
    %85 = vector.extract_strided_slice %5 {offsets = [0, 0], sizes = [8, 1], strides = [1, 1]} : vector<8x4xf32> to vector<8x1xf32>
    %86 = vector.extract_strided_slice %84 {offsets = [0, 0], sizes = [1, 64], strides = [1, 1]} : vector<4x64xf32> to vector<1x64xf32>
    %87 = vector.broadcast %85 : vector<8x1xf32> to vector<8x64xf32>
    %88 = vector.broadcast %86 : vector<1x64xf32> to vector<8x64xf32>
    %89 = arith.mulf %87, %88 : vector<8x64xf32>
    %90 = vector.extract_strided_slice %5 {offsets = [0, 1], sizes = [8, 1], strides = [1, 1]} : vector<8x4xf32> to vector<8x1xf32>
    %91 = vector.extract_strided_slice %84 {offsets = [1, 0], sizes = [1, 64], strides = [1, 1]} : vector<4x64xf32> to vector<1x64xf32>
    %92 = vector.broadcast %90 : vector<8x1xf32> to vector<8x64xf32>
    %93 = vector.broadcast %91 : vector<1x64xf32> to vector<8x64xf32>
    %94 = arith.mulf %92, %93 : vector<8x64xf32>
    %95 = arith.addf %89, %94 : vector<8x64xf32>
    %96 = vector.extract_strided_slice %5 {offsets = [0, 2], sizes = [8, 1], strides = [1, 1]} : vector<8x4xf32> to vector<8x1xf32>
    %97 = vector.extract_strided_slice %84 {offsets = [2, 0], sizes = [1, 64], strides = [1, 1]} : vector<4x64xf32> to vector<1x64xf32>
    %98 = vector.broadcast %96 : vector<8x1xf32> to vector<8x64xf32>
    %99 = vector.broadcast %97 : vector<1x64xf32> to vector<8x64xf32>
    %100 = arith.mulf %98, %99 : vector<8x64xf32>
    %101 = arith.addf %95, %100 : vector<8x64xf32>
    %102 = vector.extract_strided_slice %5 {offsets = [0, 3], sizes = [8, 1], strides = [1, 1]} : vector<8x4xf32> to vector<8x1xf32>
    %103 = vector.extract_strided_slice %84 {offsets = [3, 0], sizes = [1, 64], strides = [1, 1]} : vector<4x64xf32> to vector<1x64xf32>
    %104 = vector.broadcast %102 : vector<8x1xf32> to vector<8x64xf32>
    %105 = vector.broadcast %103 : vector<1x64xf32> to vector<8x64xf32>
    %106 = arith.mulf %104, %105 : vector<8x64xf32>
    %107 = arith.addf %101, %106 : vector<8x64xf32>
    %108 = arith.maximumf %82, %107 : vector<8x64xf32>
    %c0_6 = arith.constant 0 : index
    %c0_7 = arith.constant 0 : index
    %109 = vector.load %arg4[%c0_6, %c0_7] : memref<8x1xf32, #tpu.memory_space<vmem>>, vector<8x1xf32>
    %110 = vector.broadcast %109 : vector<8x1xf32> to vector<8x64xf32>
    %111 = arith.addf %108, %110 : vector<8x64xf32>
    %c64_i32 = arith.constant 64 : i32
    %112 = arith.muli %arg1, %c64_i32 : i32
    %113 = tpu.iota {dimensions = array<i32: 1>} : vector<1x64xi32>
    %114 = vector.broadcast %112 : i32 to vector<1x64xi32>
    %115 = arith.addi %114, %113 : vector<1x64xi32>
    %c64_i32_8 = arith.constant 64 : i32
    %116 = vector.broadcast %c64_i32_8 : i32 to vector<1x64xi32>
    %117 = arith.cmpi slt, %115, %116 : vector<1x64xi32>
    %cst = arith.constant 0.000000e+00 : f32
    %118 = vector.shape_cast %117 : vector<1x64xi1> to vector<1x64xi1>
    %119 = vector.broadcast %118 : vector<1x64xi1> to vector<8x64xi1>
    %120 = vector.broadcast %cst : f32 to vector<8x64xf32>
    %121 = arith.select %119, %111, %120 : vector<8x64xi1>, vector<8x64xf32>
    %c0_9 = arith.constant 0 : index
    %c0_10 = arith.constant 0 : index
    %c0_11 = arith.constant 0 : index
    %122 = vector.load %arg5[%c0_9, %c0_10, %c0_11] : memref<1x8x1xf32, #tpu.memory_space<vmem>>, vector<1x8x1xf32>
    %123 = vector.shape_cast %122 : vector<1x8x1xf32> to vector<8x1xf32>
    %cst_12 = arith.constant dense<0.000000e+00> : vector<8xf32>
    %124 = vector.multi_reduction <add>, %121, %cst_12 [1] : vector<8x64xf32> to vector<8xf32>
    %125 = vector.shape_cast %124 : vector<8xf32> to vector<8x1xf32>
    %126 = arith.addf %123, %125 : vector<8x1xf32>
    %c0_13 = arith.constant 0 : index
    %c0_14 = arith.constant 0 : index
    %c0_15 = arith.constant 0 : index
    %127 = vector.load %arg5[%c0_13, %c0_14, %c0_15] : memref<1x8x1xf32, #tpu.memory_space<vmem>>, vector<1x8x1xf32>
    %128 = vector.shape_cast %127 : vector<1x8x1xf32> to vector<8x1xf32>
    %129 = vector.shape_cast %126 : vector<8x1xf32> to vector<1x8x1xf32>
    tpu.vector_store %arg5[%c0_13, %c0_14, %c0_15], %129 {strides = array<i32>} : memref<1x8x1xf32, #tpu.memory_space<vmem>>, vector<1x8x1xf32>,
    %c0_16 = arith.constant 0 : index
    %c0_17 = arith.constant 0 : index
    %c0_18 = arith.constant 0 : index
    %130 = vector.load %arg6[%c0_16, %c0_17, %c0_18] : memref<1x8x1xf32, #tpu.memory_space<vmem>>, vector<1x8x1xf32>
    %131 = vector.shape_cast %130 : vector<1x8x1xf32> to vector<8x1xf32>
    %132 = arith.mulf %121, %121 : vector<8x64xf32>
    %cst_19 = arith.constant dense<0.000000e+00> : vector<8xf32>
    %133 = vector.multi_reduction <add>, %132, %cst_19 [1] : vector<8x64xf32> to vector<8xf32>
    %134 = vector.shape_cast %133 : vector<8xf32> to vector<8x1xf32>
    %135 = arith.addf %131, %134 : vector<8x1xf32>
    %c0_20 = arith.constant 0 : index
    %c0_21 = arith.constant 0 : index
    %c0_22 = arith.constant 0 : index
    %136 = vector.load %arg6[%c0_20, %c0_21, %c0_22] : memref<1x8x1xf32, #tpu.memory_space<vmem>>, vector<1x8x1xf32>
    %137 = vector.shape_cast %136 : vector<1x8x1xf32> to vector<8x1xf32>
    %138 = vector.shape_cast %135 : vector<8x1xf32> to vector<1x8x1xf32>
    tpu.vector_store %arg6[%c0_20, %c0_21, %c0_22], %138 {strides = array<i32>} : memref<1x8x1xf32, #tpu.memory_space<vmem>>, vector<1x8x1xf32>,
    return
  }
  func.func @transform_0(%arg0: i32, %arg1: i32) -> (i32, i32, i32, i32) {
    %c0_i32 = arith.constant 0 : i32
    %c0_i32_0 = arith.constant 0 : i32
    %c0_i32_1 = arith.constant 0 : i32
    return %arg0, %c0_i32, %c0_i32_0, %arg1 : i32, i32, i32, i32
  }
  func.func @transform_1(%arg0: i32, %arg1: i32) -> (i32, i32) {
    %c0_i32 = arith.constant 0 : i32
    %c0_i32_0 = arith.constant 0 : i32
    %c0_i32_1 = arith.constant 0 : i32
    return %c0_i32, %c0_i32_0 : i32, i32
  }
  func.func @transform_2(%arg0: i32, %arg1: i32) -> (i32, i32) {
    %c0_i32 = arith.constant 0 : i32
    %c0_i32_0 = arith.constant 0 : i32
    %c0_i32_1 = arith.constant 0 : i32
    return %c0_i32, %c0_i32_0 : i32, i32
  }
  func.func @transform_3(%arg0: i32, %arg1: i32) -> (i32, i32, i32) {
    %c0_i32 = arith.constant 0 : i32
    %c0_i32_0 = arith.constant 0 : i32
    %c0_i32_1 = arith.constant 0 : i32
    return %arg0, %c0_i32, %c0_i32_0 : i32, i32, i32
  }
  func.func @transform_4(%arg0: i32, %arg1: i32) -> (i32, i32, i32) {
    %c0_i32 = arith.constant 0 : i32
    %c0_i32_0 = arith.constant 0 : i32
    %c0_i32_1 = arith.constant 0 : i32
    return %arg0, %c0_i32, %c0_i32_0 : i32, i32, i32
  }
}

</mosaic_0001>

<llo_original>
// kernel: tpu_custom_call.1
$region0: #{tpu_custom_call.1}
  #allocation0 [shape = 'u32[]', space=smem, size = 0x4, offset = 0x4, fixed_abs, tag = 'smem constant byte address 0x4 - core index']
  #allocation1 [shape = 'u32[144,128]{1,0:T(1,128)}', space=vmem, size = 0x12000, scoped, tag = 'internal scratch']
  %s0 = inlined_call_operand.hbm [shape: f32[2,4,4,64], index: 0, kind: input, shape index: {}]
  %s1 = inlined_call_operand.vmem [shape: f32[8,4], index: 1, kind: input, shape index: {}]
  %s2 = inlined_call_operand.vmem [shape: f32[8,1], index: 2, kind: input, shape index: {}]
  %s3 = inlined_call_operand.vmem [shape: f32[2,8,1], index: 3, kind: output, shape index: {0}]
  %s4 = inlined_call_operand.vmem [shape: f32[2,8,1], index: 4, kind: output, shape index: {1}]
  %5 = xla_tuple %s3, %s4
  %s6 = sld [smem:[#allocation0]]
  $region61: #{tpu_custom_call.1} parent=0
    _
  %s8 = ssub.s32 1, %s6
  %s9 = scalar_select 0, %s8, %s6
  $region1: #{tpu_custom_call.1} parent=0
    #allocation2 [shape = 'u8[16384]{0}', space=vmem, size = 0x4000, scoped, tag = 'input window, operand 0']
    #allocation3 [shape = 's32[2]{0}', space=sflag, size = 0x8, scoped, tag = 'scoped memory for tpu_custom_call.1']
    %10 = vsyncpa [#allocation3], 0
    %s11 = scalar_lea.sflag [#allocation3], 1
    %12 = vsyncpa %s11, 0
    loop: start=0, step=1, limit=4
    $region2: #{tpu_custom_call.1} parent=1 // loop_pre_header
      _
    $region3: #{tpu_custom_call.1} parent=1 // loop_header
      %s14 = sphi 0, %s18
      %p15 = scmp.ge.s32.totalorder %s14, 4
      %s21 = sphi 0, %s33
      %s22 = sphi 0, %s29
      %s23 = sphi 0, %s21
      %s24 = sphi 0, %s22
      %s25 = sphi 0, %s23
      %s26 = sphi 0, %s24
      %s38 = sphi 0, %s40
      %s41 = sphi 0, %s38
      %s42 = sphi 0, %s41
      %s58 = sphi 0, %s42
      %s62 = sphi 0, %s62
      %s64 = sphi 0, %s62
      %s65 = sphi 0, %s64
      %s79 = sphi 0, %s65
      %s83 = sphi 0, %s83
      %s85 = sphi 0, %s83
      %s86 = sphi 0, %s85
      %s100 = sphi 0, %s86
      %s106 = sphi 0, %s108
      %s109 = sphi 0, %s106
      %s110 = sphi 0, %s109
      %s126 = sphi 0, %s110
      %s132 = sphi 0, %s134
      %s135 = sphi 0, %s132
      %s136 = sphi 0, %s135
      %s152 = sphi 0, %s136
    $region4: #{tpu_custom_call.1} parent=1 // loop_header_branch
      %17 = sbr.rel (%p15) target = $region8
    $region5: #{tpu_custom_call.1} parent=1 // loop_body
      %s19 = ssub.s32 %s14, 1
      %s20 = ssub.s32 %s14, 2
      %s27 = sadd.s32 1, %s22
      %p28 = scmp.ge.s32.totalorder %s27, 1
      %s29 = scalar_select %p28, 0, %s27
      %s30 = sadd.s32 1, %s21
      %s31 = scalar_select %p28, %s30, %s21
      %p32 = scmp.ge.s32.totalorder %s31, 2
      %s33 = scalar_select %p32, 0, %s31
      %s34 = ssub.s32 %s21, %s33
      %s35 = ssub.s32 %s22, %s29
      %s36 = sor.u32 %s34, %s35
      %p37 = scmp.eq.s32.totalorder %s36, 0
      %s39 = sadd.s32 %s38, 1
      %s40 = scalar_select %p37, %s38, %s39
      %p43 = pneg %p37
      %p44 = scmp.eq.s32.totalorder %s14, 1
      %p45 = por %p43, %p44
      %p46 = scmp.ne.s32.totalorder %s38, %s41
      %p47 = scmp.eq.s32.totalorder %s14, 0
      %p48 = por %p46, %p47
      %p49 = scmp.ne.s32.totalorder %s38, %s41
      %p50 = scmp.eq.s32.totalorder %s19, 1
      %p51 = por %p49, %p50
      %p52 = scmp.ne.s32.totalorder %s41, %s42
      %p53 = scmp.eq.s32.totalorder %s19, 0
      %p54 = por %p52, %p53
      %p55 = scmp.ne.s32.totalorder %s41, %s42
      %p56 = scmp.eq.s32.totalorder %s20, 1
      %p57 = por %p55, %p56
      %p59 = scmp.ne.s32.totalorder %s42, %s58
      %p60 = scmp.eq.s32.totalorder %s20, 0
      %p61 = por %p59, %p60
      %s63 = sadd.s32 %s62, 1
      %p66 = scmp.eq.s32.totalorder %s14, 1
      %p67 = scmp.ne.s32.totalorder %s62, %s64
      %p68 = scmp.eq.s32.totalorder %s14, 0
      %p69 = por %p67, %p68
      %p70 = scmp.ne.s32.totalorder %s62, %s64
      %p71 = scmp.eq.s32.totalorder %s19, 1
      %p72 = por %p70, %p71
      %p73 = scmp.ne.s32.totalorder %s64, %s65
      %p74 = scmp.eq.s32.totalorder %s19, 0
      %p75 = por %p73, %p74
      %p76 = scmp.ne.s32.totalorder %s64, %s65
      %p77 = scmp.eq.s32.totalorder %s20, 1
      %p78 = por %p76, %p77
      %p80 = scmp.ne.s32.totalorder %s65, %s79
      %p81 = scmp.eq.s32.totalorder %s20, 0
      %p82 = por %p80, %p81
      %s84 = sadd.s32 %s83, 1
      %p87 = scmp.eq.s32.totalorder %s14, 1
      %p88 = scmp.ne.s32.totalorder %s83, %s85
      %p89 = scmp.eq.s32.totalorder %s14, 0
      %p90 = por %p88, %p89
      %p91 = scmp.ne.s32.totalorder %s83, %s85
      %p92 = scmp.eq.s32.totalorder %s19, 1
      %p93 = por %p91, %p92
      %p94 = scmp.ne.s32.totalorder %s85, %s86
      %p95 = scmp.eq.s32.totalorder %s19, 0
      %p96 = por %p94, %p95
      %p97 = scmp.ne.s32.totalorder %s85, %s86
      %p98 = scmp.eq.s32.totalorder %s20, 1
      %p99 = por %p97, %p98
      %p101 = scmp.ne.s32.totalorder %s86, %s100
      %p102 = scmp.eq.s32.totalorder %s20, 0
      %p103 = por %p101, %p102
      %s104 = ssub.s32 %s21, %s33
      %p105 = scmp.eq.s32.totalorder %s104, 0
      %s107 = sadd.s32 %s106, 1
      %s108 = scalar_select %p105, %s106, %s107
      %p111 = pneg %p105
      %p112 = scmp.eq.s32.totalorder %s14, 1
      %p113 = por %p111, %p112
      %p114 = scmp.ne.s32.totalorder %s106, %s109
      %p115 = scmp.eq.s32.totalorder %s14, 0
      %p116 = por %p114, %p115
      %p117 = scmp.ne.s32.totalorder %s106, %s109
      %p118 = scmp.eq.s32.totalorder %s19, 1
      %p119 = por %p117, %p118
      %p120 = scmp.ne.s32.totalorder %s109, %s110
      %p121 = scmp.eq.s32.totalorder %s19, 0
      %p122 = por %p120, %p121
      %p123 = scmp.ne.s32.totalorder %s109, %s110
      %p124 = scmp.eq.s32.totalorder %s20, 1
      %p125 = por %p123, %p124
      %p127 = scmp.ne.s32.totalorder %s110, %s126
      %p128 = scmp.eq.s32.totalorder %s20, 0
      %p129 = por %p127, %p128
      %s130 = ssub.s32 %s21, %s33
      %p131 = scmp.eq.s32.totalorder %s130, 0
      %s133 = sadd.s32 %s132, 1
      %s134 = scalar_select %p131, %s132, %s133
      %p137 = pneg %p131
      %p138 = scmp.eq.s32.totalorder %s14, 1
      %p139 = por %p137, %p138
      %p140 = scmp.ne.s32.totalorder %s132, %s135
      %p141 = scmp.eq.s32.totalorder %s14, 0
      %p142 = por %p140, %p141
      %p143 = scmp.ne.s32.totalorder %s132, %s135
      %p144 = scmp.eq.s32.totalorder %s19, 1
      %p145 = por %p143, %p144
      %p146 = scmp.ne.s32.totalorder %s135, %s136
      %p147 = scmp.eq.s32.totalorder %s19, 0
      %p148 = por %p146, %p147
      %p149 = scmp.ne.s32.totalorder %s135, %s136
      %p150 = scmp.eq.s32.totalorder %s20, 1
      %p151 = por %p149, %p150
      %p153 = scmp.ne.s32.totalorder %s136, %s152
      %p154 = scmp.eq.s32.totalorder %s20, 0
      %p155 = por %p153, %p154
      %p156 = scmp.le.s32.totalorder 1, %s14
      %p157 = scmp.lt.s32.totalorder %s14, 3
      %p158 = pnand %p156, %p157
      %p159 = pneg %p158
      // Predicated region
      $region9: #{tpu_custom_call.1} parent=5 // pred_check
        _
      $region10: #{tpu_custom_call.1} parent=5 // pred_check_branch
        %161 = sbr.rel (%p158) target = $region12
      $region11: #{tpu_custom_call.1} parent=5 // pred_region
        %s162 = ssub.s32 %s14, 1
        // Predicated region
        $region13: #{tpu_custom_call.1} parent=11 // pred_check
          %p163 = pneg %p75
        $region14: #{tpu_custom_call.1} parent=11 // pred_check_branch
          %165 = sbr.rel (%p163) target = $region16
        $region15: #{tpu_custom_call.1} parent=11 // pred_region
          _
        $region16: #{tpu_custom_call.1} parent=11 // pred_fallthru
          _
        // Predicated region
        $region17: #{tpu_custom_call.1} parent=11 // pred_check
          %p166 = pneg %p96
        $region18: #{tpu_custom_call.1} parent=11 // pred_check_branch
          %168 = sbr.rel (%p166) target = $region20
        $region19: #{tpu_custom_call.1} parent=11 // pred_region
          _
        $region20: #{tpu_custom_call.1} parent=11 // pred_fallthru
          _
      $region12: #{tpu_custom_call.1} parent=5 // pred_fallthru
        _
      %p169 = scmp.lt.s32.totalorder %s14, 2
      // Predicated region
      $region21: #{tpu_custom_call.1} parent=5 // pred_check
        %p170 = pneg %p169
      $region22: #{tpu_custom_call.1} parent=5 // pred_check_branch
        %172 = sbr.rel (%p170) target = $region24
      $region23: #{tpu_custom_call.1} parent=5 // pred_region
        // Predicated region
        $region25: #{tpu_custom_call.1} parent=23 // pred_check
          %p173 = pneg %p48
        $region26: #{tpu_custom_call.1} parent=23 // pred_check_branch
          %175 = sbr.rel (%p173) target = $region28
        $region27: #{tpu_custom_call.1} parent=23 // pred_region
          %s176 = sand.u32 %s38, 1
          %s177 = scalar_lea.sflag [#allocation3], %s176
          %s178 = sand.u32 %s38, 1
          %s179 = smul.addr %s178, 16
          %s180 = scalar_lea.vmem [#allocation2], %s179
          %s182 = ssub.s32 256, 256
          %183 = vsyncadd %s177, %s182
          %s184 = smul.addr %s21, 4
          %s185 = sadd.s32 %s22, %s184
          %s186 = smul.addr %s185, 64
          %s187 = scalar_lea.hbm %s0, %s186
          %s188 = sshll.u32 %s180, 4
          %s189 = int_to_ptr.vmem [resolvable:$true] %s188
          %194 = dma.hbm_to_vmem [thread:$0]  %s187, 256, %s189, %s177, 64, 64, 4
        $region28: #{tpu_custom_call.1} parent=23 // pred_fallthru
          _
      $region24: #{tpu_custom_call.1} parent=5 // pred_fallthru
        _
      %p195 = scmp.le.s32.totalorder 1, %s14
      %p196 = scmp.lt.s32.totalorder %s14, 3
      %p197 = pnand %p195, %p196
      %p198 = pneg %p197
      // Predicated region
      $region29: #{tpu_custom_call.1} parent=5 // pred_check
        _
      $region30: #{tpu_custom_call.1} parent=5 // pred_check_branch
        %200 = sbr.rel (%p197) target = $region32
      $region31: #{tpu_custom_call.1} parent=5 // pred_region
        %s201 = ssub.s32 %s14, 1
        %s202 = sand.u32 %s41, 1
        %s203 = scalar_lea.sflag [#allocation3], %s202
        %s204 = sand.u32 %s41, 1
        %s205 = smul.addr %s204, 16
        %s206 = scalar_lea.vmem [#allocation2], %s205
        // Predicated region
        $region33: #{tpu_custom_call.1} parent=31 // pred_check
          %p207 = pneg %p54
        $region34: #{tpu_custom_call.1} parent=31 // pred_check_branch
          %209 = sbr.rel (%p207) target = $region36
        $region35: #{tpu_custom_call.1} parent=31 // pred_region
          %210 = dma.done %s203, 256
        $region36: #{tpu_custom_call.1} parent=31 // pred_fallthru
          _
        %s211 = sand.u32 %s41, 1
        %s212 = scalar_lea.sflag [#allocation3], %s211
        %s213 = sand.u32 %s41, 1
        %s214 = smul.addr %s213, 16
        %s215 = scalar_lea.vmem [#allocation2], %s214
        %p216 = pneg %p54
        %p217 = pneg %p51
        %p218 = pneg %p75
        %p219 = pneg %p72
        %p220 = pneg %p96
        %p221 = pneg %p93
        %p222 = pneg %p122
        %p223 = pneg %p119
        %p224 = scmp.lt.s32.totalorder %s23, 1
        %s225 = scalar_select %p224, %s23, 1
        %s226 = smul.addr %s225, 8
        %s227 = scalar_lea.vmem %s3, %s226
        %p228 = pneg %p148
        %p229 = pneg %p145
        %p230 = scmp.lt.s32.totalorder %s23, 1
        %s231 = scalar_select %p230, %s23, 1
        %s232 = smul.addr %s231, 8
        %s233 = scalar_lea.vmem %s4, %s232
        %p234 = scmp.lt.s32.totalorder %s23, 1
        %s235 = scalar_select %p234, %s23, 1
        %s236 = smul.addr %s235, 8
        %s237 = scalar_lea.vmem %s3, %s236
        %p238 = scmp.lt.s32.totalorder %s23, 1
        %s239 = scalar_select %p238, %s23, 1
        %s240 = smul.addr %s239, 8
        %s241 = scalar_lea.vmem %s4, %s240
        %p242 = scmp.eq.s32.totalorder %s24, 0
        // Predicated region
        $region37: #{tpu_custom_call.1} parent=31 // pred_check
          %p243 = pneg %p242
        $region38: #{tpu_custom_call.1} parent=31 // pred_check_branch
          %245 = sbr.rel (%p243) target = $region40
        $region39: #{tpu_custom_call.1} parent=31 // pred_region
          %vm246 = vcmask 7168
          %247 = vst.msk [vmem:[%s237] sm:$0xff] %vm246, 0.0
          %248 = vst.msk [vmem:[%s241] sm:$0xff] %vm246, 0.0
        $region40: #{tpu_custom_call.1} parent=31 // pred_fallthru
          _
        %v249 = vld [vmem:[%s206] sm:$0xf]
        %v250 = vld [vmem:[%s206 + $0x4] sm:$0xf]
        %v251 = vld [vmem:[%s206 + $0x8] sm:$0xf]
        %v252 = vld [vmem:[%s206 + $0xc] sm:$0xf]
        %v253 = vld [vmem:[%s1] sm:$0xff]
        %255 = vset.pattern.permute.xlu0 0
        %256 = vperm.xlu0 %255, %v253
        %v257 = vpop.permute.xlu0 %256
        %v259 = vlaneseq
        %v260 = vshrl.u32 %v259, 7
        %v261 = vsub.s32 0, %v260
        %v262 = vrot.slane %v249, %v261
        %v263 = vmul.f32 %v257, %v262
        %264 = vset.pattern.permute.xlu0 1
        %265 = vperm.xlu0 %264, %v253
        %v266 = vpop.permute.xlu0 %265
        %v268 = vlaneseq
        %v269 = vshrl.u32 %v268, 7
        %v270 = vsub.s32 1, %v269
        %v271 = vrot.slane %v249, %v270
        %v272 = vmul.f32 %v266, %v271
        %v273 = vadd.f32 %v263, %v272
        %274 = vset.pattern.permute.xlu0 2
        %275 = vperm.xlu0 %274, %v253
        %v276 = vpop.permute.xlu0 %275
        %v278 = vlaneseq
        %v279 = vshrl.u32 %v278, 7
        %v280 = vsub.s32 2, %v279
        %v281 = vrot.slane %v249, %v280
        %v282 = vmul.f32 %v276, %v281
        %v283 = vadd.f32 %v273, %v282
        %284 = vset.pattern.permute.xlu0 3
        %285 = vperm.xlu0 %284, %v253
        %v286 = vpop.permute.xlu0 %285
        %v288 = vlaneseq
        %v289 = vshrl.u32 %v288, 7
        %v290 = vsub.s32 3, %v289
        %v291 = vrot.slane %v249, %v290
        %v292 = vmul.f32 %v286, %v291
        %v293 = vadd.f32 %v283, %v292
        %v294 = vlaneseq
        %v295 = vshrl.u32 %v294, 7
        %v296 = vsub.s32 0, %v295
        %v297 = vrot.slane %v250, %v296
        %v298 = vmul.f32 %v257, %v297
        %v299 = vlaneseq
        %v300 = vshrl.u32 %v299, 7
        %v301 = vsub.s32 1, %v300
        %v302 = vrot.slane %v250, %v301
        %v303 = vmul.f32 %v266, %v302
        %v304 = vadd.f32 %v298, %v303
        %v305 = vlaneseq
        %v306 = vshrl.u32 %v305, 7
        %v307 = vsub.s32 2, %v306
        %v308 = vrot.slane %v250, %v307
        %v309 = vmul.f32 %v276, %v308
        %v310 = vadd.f32 %v304, %v309
        %v311 = vlaneseq
        %v312 = vshrl.u32 %v311, 7
        %v313 = vsub.s32 3, %v312
        %v314 = vrot.slane %v250, %v313
        %v315 = vmul.f32 %v286, %v314
        %v316 = vadd.f32 %v310, %v315
        %v317 = vmax.f32 %v293, %v316
        %v318 = vlaneseq
        %v319 = vshrl.u32 %v318, 7
        %v320 = vsub.s32 0, %v319
        %v321 = vrot.slane %v251, %v320
        %v322 = vmul.f32 %v257, %v321
        %v323 = vlaneseq
        %v324 = vshrl.u32 %v323, 7
        %v325 = vsub.s32 1, %v324
        %v326 = vrot.slane %v251, %v325
        %v327 = vmul.f32 %v266, %v326
        %v328 = vadd.f32 %v322, %v327
        %v329 = vlaneseq
        %v330 = vshrl.u32 %v329, 7
        %v331 = vsub.s32 2, %v330
        %v332 = vrot.slane %v251, %v331
        %v333 = vmul.f32 %v276, %v332
        %v334 = vadd.f32 %v328, %v333
        %v335 = vlaneseq
        %v336 = vshrl.u32 %v335, 7
        %v337 = vsub.s32 3, %v336
        %v338 = vrot.slane %v251, %v337
        %v339 = vmul.f32 %v286, %v338
        %v340 = vadd.f32 %v334, %v339
        %v341 = vmax.f32 %v317, %v340
        %v342 = vlaneseq
        %v343 = vshrl.u32 %v342, 7
        %v344 = vsub.s32 0, %v343
        %v345 = vrot.slane %v252, %v344
        %v346 = vmul.f32 %v257, %v345
        %v347 = vlaneseq
        %v348 = vshrl.u32 %v347, 7
        %v349 = vsub.s32 1, %v348
        %v350 = vrot.slane %v252, %v349
        %v351 = vmul.f32 %v266, %v350
        %v352 = vadd.f32 %v346, %v351
        %v353 = vlaneseq
        %v354 = vshrl.u32 %v353, 7
        %v355 = vsub.s32 2, %v354
        %v356 = vrot.slane %v252, %v355
        %v357 = vmul.f32 %v276, %v356
        %v358 = vadd.f32 %v352, %v357
        %v359 = vlaneseq
        %v360 = vshrl.u32 %v359, 7
        %v361 = vsub.s32 3, %v360
        %v362 = vrot.slane %v252, %v361
        %v363 = vmul.f32 %v286, %v362
        %v364 = vadd.f32 %v358, %v363
        %v365 = vmax.f32 %v341, %v364
        %v366 = vld [vmem:[%s2] sm:$0xff]
        %368 = vset.pattern.permute.xlu0 0
        %369 = vperm.xlu0 %368, %v366
        %v370 = vpop.permute.xlu0 %369
        %v372 = vadd.f32 %v365, %v370
        %s373 = smul.u32 %s24, 64
        %v374 = vlaneseq
        %v375 = vand.u32 %v374, 127
        %v376 = vstv %s373
        %v377 = vadd.s32 %v376, %v375
        %vm378 = vcmp.lt.s32.totalorder %v377, 64
        %v379 = vsel %vm378, 1, 0
        %vm380 = vcmp.eq.s32.totalorder %v379, 1
        %v381 = vsel %vm380, %v372, 0.0
        %v382 = vld [vmem:[%s237] sm:$0xff]
        %vm383 = vcmask 523264
        %v384 = vsel %vm383, %v381, 0.0
        %385 = vadd.xlane.f32.xlu0 %v384
        %v386 = vpop.xlane.xlu0 %385
        %v387 = vadd.f32 %v382, %v386
        %vm388 = vcmask 7168
        %389 = vst.msk [vmem:[%s237] sm:$0xff] %vm388, %v387
        %v390 = vld [vmem:[%s241] sm:$0xff]
        %v391 = vmul.f32 %v381, %v381
        %v392 = vsel %vm383, %v391, 0.0
        %393 = vadd.xlane.f32.xlu0 %v392
        %v394 = vpop.xlane.xlu0 %393
        %v395 = vadd.f32 %v390, %v394
        %396 = vst.msk [vmem:[%s241] sm:$0xff] %vm388, %v395
        %p397 = scmp.lt.s32.totalorder %s23, 1
        %s398 = scalar_select %p397, %s23, 1
        %s399 = smul.addr %s398, 8
        %s400 = scalar_lea.vmem %s3, %s399
        %p401 = scmp.lt.s32.totalorder %s23, 1
        %s402 = scalar_select %p401, %s23, 1
        %s403 = smul.addr %s402, 8
        %s404 = scalar_lea.vmem %s4, %s403
        // Predicated region
        $region41: #{tpu_custom_call.1} parent=31 // pred_check
          %p405 = pneg %p119
        $region42: #{tpu_custom_call.1} parent=31 // pred_check_branch
          %407 = sbr.rel (%p405) target = $region44
        $region43: #{tpu_custom_call.1} parent=31 // pred_region
          _
        $region44: #{tpu_custom_call.1} parent=31 // pred_fallthru
          _
        // Predicated region
        $region45: #{tpu_custom_call.1} parent=31 // pred_check
          %p408 = pneg %p145
        $region46: #{tpu_custom_call.1} parent=31 // pred_check_branch
          %410 = sbr.rel (%p408) target = $region48
        $region47: #{tpu_custom_call.1} parent=31 // pred_region
          _
        $region48: #{tpu_custom_call.1} parent=31 // pred_fallthru
          _
      $region32: #{tpu_custom_call.1} parent=5 // pred_fallthru
        _
      %p411 = scmp.le.s32.totalorder 2, %s14
      // Predicated region
      $region49: #{tpu_custom_call.1} parent=5 // pred_check
        %p412 = pneg %p411
      $region50: #{tpu_custom_call.1} parent=5 // pred_check_branch
        %414 = sbr.rel (%p412) target = $region52
      $region51: #{tpu_custom_call.1} parent=5 // pred_region
        %s415 = ssub.s32 %s14, 2
        // Predicated region
        $region53: #{tpu_custom_call.1} parent=51 // pred_check
          %p416 = pneg %p125
        $region54: #{tpu_custom_call.1} parent=51 // pred_check_branch
          %418 = sbr.rel (%p416) target = $region56
        $region55: #{tpu_custom_call.1} parent=51 // pred_region
          %p419 = scmp.lt.s32.totalorder %s25, 1
          %s420 = scalar_select %p419, %s25, 1
          %s421 = smul.addr %s420, 8
          %s422 = scalar_lea.vmem %s3, %s421
        $region56: #{tpu_custom_call.1} parent=51 // pred_fallthru
          _
        // Predicated region
        $region57: #{tpu_custom_call.1} parent=51 // pred_check
          %p423 = pneg %p151
        $region58: #{tpu_custom_call.1} parent=51 // pred_check_branch
          %425 = sbr.rel (%p423) target = $region60
        $region59: #{tpu_custom_call.1} parent=51 // pred_region
          %p426 = scmp.lt.s32.totalorder %s25, 1
          %s427 = scalar_select %p426, %s25, 1
          %s428 = smul.addr %s427, 8
          %s429 = scalar_lea.vmem %s4, %s428
        $region60: #{tpu_custom_call.1} parent=51 // pred_fallthru
          _
      $region52: #{tpu_custom_call.1} parent=5 // pred_fallthru
        _
    $region6: #{tpu_custom_call.1} parent=1 // loop_footer
      %s18 = sadd.s32 1, %s14
    $region7: #{tpu_custom_call.1} parent=1 // loop_footer_branch
      %13 = sbr.rel target = $region3
    $region8: #{tpu_custom_call.1} parent=1 // loop_exit
      _
    %430 = vsyncpa [#allocation3], 1
    %s431 = scalar_lea.sflag [#allocation3], 1
    %432 = vsyncpa %s431, 1

</llo_original>
